<compile_context>
chip_gen: v6e
topology: v6e:2x2x1
jax: 0.10.0
libtpu: 0.0.40
codegen_flags: <defaults>
</compile_context>

<pallas_src>
import functools

import jax
import jax.numpy as jnp
from jax.experimental import pallas as pl
from jax.experimental.pallas import tpu as pltpu


def _round_up(x, m):
    return ((x + m - 1) // m) * m


# --------------------- kernel-side activation functions ---------------------

def _erf_approx_kernel(z):
    """Abramowitz & Stegun 7.1.26 erf (|abs err| < 1.5e-7).

    The 1/(1 + p*|z|) divide is pushed to the EUP with pl.reciprocal(approx=True)
    plus one Newton-Raphson step (added error << 1e-6), keeping the f32 VALU
    chain of the epilogue short (v6e/v7x have no f32 FMA).  exp also runs on
    the EUP slot.
    """
    p = 0.3275911
    a1, a2, a3, a4, a5 = (0.254829592, -0.284496736, 1.421413741,
                          -1.453152027, 1.061405429)
    az = jnp.abs(z)
    d = 1.0 + p * az
    t = pl.reciprocal(d, approx=True)      # EUP (otherwise-idle slot)
    t = t * (2.0 - d * t)                  # one Newton refinement
    poly = ((((a5 * t + a4) * t + a3) * t + a2) * t + a1) * t
    y = 1.0 - poly * jnp.exp(-az * az)     # exp -> EUP
    return jnp.where(z >= 0, y, -y)


def _gelu_kernel(x):
    # Exact (erf-based) GELU, HF 'gelu'.  Reuse h = 0.5*x (h + h*erf form).
    h = 0.5 * x
    return h + h * _erf_approx_kernel(x * 0.7071067811865476)


def _relu(x):
    return jnp.maximum(x, 0.0)


def _swish(x):
    return x * jax.nn.sigmoid(x)


def _softplus(x):
    return jnp.where(x > 20.0, x, jnp.log1p(jnp.exp(jnp.minimum(x, 20.0))))


def _mish(x):
    return x * jnp.tanh(_softplus(x))


def _gelu_new(x):
    c = 0.7978845608028654  # sqrt(2/pi)
    return 0.5 * x * (1.0 + jnp.tanh(c * (x + 0.044715 * x * x * x)))


_KERNEL_ACT2FN = {"gelu": _gelu_kernel, "relu": _relu, "swish": _swish,
                  "gelu_new": _gelu_new, "mish": _mish}


# ------------------------------- kernel -------------------------------------

def bert_intermediate_kernel(x_ref, w_ref, b_ref, o_ref, *, act_fn, tn):
    # x_ref: (tm, H) f32 ; w_ref: (H, I) bf16 ; b_ref: (1, I) f32 ; o_ref: (tm, I)
    x = x_ref[...].astype(w_ref.dtype)     # in-kernel bf16 cast (~1 VPU op/elem)
    n_chunks = o_ref.shape[1] // tn
    # Unrolled column-chunk loop: (tm, tn) f32 accumulator per slab (no (tm, I)
    # spill), and MXU work of slab j+1 overlaps the VPU/EUP epilogue of slab j.
    for j in range(n_chunks):
        sl = slice(j * tn, (j + 1) * tn)   # static, lane-aligned slice
        acc = jnp.dot(x, w_ref[:, sl], preferred_element_type=jnp.float32)
        acc = acc + b_ref[:, sl]           # f32 bias broadcast over rows
        o_ref[:, sl] = act_fn(acc).astype(o_ref.dtype)


# ------------------------------- wrapper -------------------------------------

def _pick_col_chunk(I, target=512):
    """Largest multiple of 128 that divides I and is <= target (else I)."""
    if I % 128 != 0:
        return I
    best = 128
    c = 128
    while c <= min(target, I):
        if I % c == 0:
            best = c
        c += 128
    return best


def _choose_row_tile(rows, tm_req):
    """Row tile: multiple of 16 (bf16 packing), >= 2 tiles for short inputs."""
    tm_req = max(16, tm_req)
    if rows > tm_req:
        return _round_up(tm_req, 16)
    tm = max(16, _round_up(pl.cdiv(rows, 2), 16))   # split so both v7x TCs get work
    return min(tm, _round_up(rows, 8))


def _is_v5e():
    try:
        kind = jax.devices()[0].device_kind.lower()
    except Exception:
        return False
    return ("v5e" in kind) or ("v5 lite" in kind) or ("v5litepod" in kind)


def bert_intermediate(hidden_states, weight, bias, *, act="gelu", tm=512,
                      tn_inner=512, matmul_dtype=jnp.bfloat16):
    """hidden_states: [B, S, H]; weight: [H, I] (transpose of torch [I, H]); bias: [I]."""
    B, S, H = hidden_states.shape
    I = weight.shape[1]
    rows = B * S

    # Activations stay f32 in HBM; bf16 cast happens in-kernel (no wrapper-side
    # astype/pad passes).  The weight should be pre-cast once at model setup;
    # cast here only if the caller did not.
    x2d = hidden_states.reshape(rows, H)
    if weight.dtype != matmul_dtype:
        weight = weight.astype(matmul_dtype)
    b2d = bias.reshape(1, I).astype(jnp.float32)

    tn = _pick_col_chunk(I, tn_inner)
    tm = _choose_row_tile(rows, tm)

    # Per-generation VMEM budget: never above 75% of physical per-core VMEM
    # (v7x has only 64 MiB).
    try:
        vmem_cap = int(pltpu.get_tpu_info().vmem_capacity_bytes)
    except Exception:
        vmem_cap = 64 << 20                       # conservative (v7x) fallback
    vmem_budget = int(vmem_cap * 0.75)

    x_elem = jnp.dtype(hidden_states.dtype).itemsize
    w_elem = jnp.dtype(matmul_dtype).itemsize
    o_elem = jnp.dtype(hidden_states.dtype).itemsize
    out_bufs = 3 if _is_v5e() else 2              # v5e: hide f32 writeback on weak HBM

    def estimate_vmem(tm_, w_bufs):
        body_tmp = tm_ * (H * w_elem + 2 * tn * 4)      # bf16 x copy + slab temps
        return int(1.25 * (2 * tm_ * H * x_elem          # double-buffered input tiles
                           + out_bufs * tm_ * I * o_elem  # output tiles
                           + w_bufs * H * I * w_elem      # resident weight
                           + 2 * I * 4                    # bias
                           + body_tmp))

    while tm > 64 and estimate_vmem(tm, 1) > vmem_budget:
        tm //= 2                                   # shrink row tile before giving up
    # TODO(synk): add an I-tiled (second grid axis) weight path for configs where
    # H*I*w_elem alone exceeds ~1/3 of per-core VMEM (beyond BERT-large on v7x).
    vmem_bytes = int(min(max(estimate_vmem(tm, 2), 16 << 20), vmem_budget))

    grid = (pl.cdiv(rows, tm),)                    # ragged last tile handled by Pallas
    kernel = functools.partial(bert_intermediate_kernel,
                               act_fn=_KERNEL_ACT2FN[act], tn=tn)
    out_shape = jax.ShapeDtypeStruct((rows, I), hidden_states.dtype)
    compiler_params = pltpu.CompilerParams(
        dimension_semantics=("parallel",),         # megacore-shardable on v7x
        vmem_limit_bytes=vmem_bytes)

    def run(use_pipeline_mode):
        if use_pipeline_mode:
            # Constant-index weight/bias single-buffered (reclaims H*I bytes of
            # VMEM on v7x); output buffering deepened on v5e.
            w_spec = pl.BlockSpec((H, I), lambda i: (0, 0),
                                  pipeline_mode=pl.Buffered(1))
            b_spec = pl.BlockSpec((1, I), lambda i: (0, 0),
                                  pipeline_mode=pl.Buffered(1))
            o_spec = pl.BlockSpec((tm, I), lambda i: (i, 0),
                                  pipeline_mode=pl.Buffered(out_bufs))
        else:
            w_spec = pl.BlockSpec((H, I), lambda i: (0, 0))
            b_spec = pl.BlockSpec((1, I), lambda i: (0, 0))
            o_spec = pl.BlockSpec((tm, I), lambda i: (i, 0))
        return pl.pallas_call(
            kernel,
            out_shape=out_shape,
            grid_spec=pltpu.PrefetchScalarGridSpec(
                num_scalar_prefetch=0,
                grid=grid,
                in_specs=[
                    pl.BlockSpec((tm, H), lambda i: (i, 0)),  # f32 activation rows
                    w_spec,                                   # bf16 weight, resident
                    b_spec,                                   # f32 bias
                ],
                out_specs=o_spec,
            ),
            compiler_params=compiler_params,
        )(x2d, weight, b2d)

    try:
        out2d = run(True)
    except Exception:
        # pipeline_mode / pl.Buffered not supported by this jax build: fall back
        # to default double-buffering (correctness identical).
        out2d = run(False)

    return out2d.reshape(B, S, I)


# ------------------------------ reference -----------------------------------

def reference(hidden_states, weight, bias, *, act="gelu",
              matmul_dtype=jnp.bfloat16):
    x = jnp.dot(hidden_states.astype(matmul_dtype), weight.astype(matmul_dtype),
                preferred_element_type=jnp.float32)
    x = x + bias.astype(jnp.float32)
    if act == "gelu":
        # Exact erf-based GELU (matches PyTorch BertIntermediate default).
        y = x * 0.5 * (1.0 + jax.scipy.special.erf(x * 0.7071067811865476))
    elif act == "relu":
        y = _relu(x)
    elif act == "swish":
        y = _swish(x)
    elif act == "gelu_new":
        y = _gelu_new(x)
    else:
        y = _mish(x)
    return y.astype(hidden_states.dtype)


if __name__ == "__main__":
    # Small BERT-like config: batch=2, seq=8, hidden=128, intermediate=512.
    B, S, H, I = 2, 8, 128, 512

    key = jax.random.PRNGKey(0)
    k1, k2, k3 = jax.random.split(key, 3)

    hidden_states = jax.random.normal(k1, (B, S, H), dtype=jnp.float32)
    # nn.Linear(H, I): torch weight is [I, H]; stored pre-transposed [H, I].
    weight = jax.random.uniform(k2, (H, I), minval=-1.0, maxval=1.0,
                                dtype=jnp.float32) / jnp.sqrt(float(H))
    bias = jax.random.uniform(k3, (I,), minval=-1.0, maxval=1.0,
                              dtype=jnp.float32) / jnp.sqrt(float(H))

    # Pre-cast the weight to bf16 once at "model setup" (not per call).
    weight_bf16 = weight.astype(jnp.bfloat16)

    out = bert_intermediate(hidden_states, weight_bf16, bias, act="gelu")
    out = jax.block_until_ready(out)

    ref = reference(hidden_states, weight, bias, act="gelu")
    assert out.shape == (B, S, I)
    max_err = float(jnp.max(jnp.abs(out - ref)))
    assert jnp.allclose(out, ref, atol=1e-4, rtol=1e-4), (
        f"mismatch vs reference, max abs err = {max_err}")

    print("KERNEL_OK")
</pallas_src>

<mosaic_0001>
module attributes {stable_mosaic.version = 11 : i64} {
  func.func @bert_intermediate_kernel(%arg0: i32, %arg1: memref<16x128xf32, #tpu.memory_space<vmem>>, %arg2: memref<128x512xbf16, #tpu.memory_space<vmem>>, %arg3: memref<1x512xf32, #tpu.memory_space<vmem>>, %arg4: memref<16x512xf32, #tpu.memory_space<vmem>>) attributes {dimension_semantics = [#tpu.dimension_semantics<parallel>], iteration_bounds = array<i64: 1>, scalar_prefetch = 0 : i64, scratch_operands = 0 : i64, tpu.core_type = #tpu.core_type<tc>, window_params = [{transform_indices = @transform_0, window_bounds = array<i64: 16, 128>}, {pipeline_mode = #tpu.pipeline_mode<synchronous>, transform_indices = @transform_1, window_bounds = array<i64: 128, 512>}, {pipeline_mode = #tpu.pipeline_mode<synchronous>, transform_indices = @transform_2, window_bounds = array<i64: 1, 512>}, {pipeline_mode = #tpu.pipeline_mode<double_buffered>, transform_indices = @transform_3, window_bounds = array<i64: 16, 512>}]} {
    %c0 = arith.constant 0 : index
    %c0_0 = arith.constant 0 : index
    %0 = vector.load %arg1[%c0, %c0_0] : memref<16x128xf32, #tpu.memory_space<vmem>>, vector<16x128xf32>
    %1 = arith.truncf %0 : vector<16x128xf32> to vector<16x128xbf16>
    %c0_1 = arith.constant 0 : index
    %c0_2 = arith.constant 0 : index
    %2 = vector.load %arg2[%c0_1, %c0_2] : memref<128x512xbf16, #tpu.memory_space<vmem>>, vector<128x512xbf16>
    %cst = arith.constant dense<0.000000e+00> : vector<16x512xf32>
    %3 = tpu.matmul %1, %2, %cst {dimension_numbers = #tpu.dot_dimension_numbers<[1], [0], [0], [1], [0, 0, 1, 1], [], []>} : vector<16x128xbf16>, vector<128x512xbf16>, vector<16x512xf32> -> vector<16x512xf32>
    %c0_3 = arith.constant 0 : index
    %c0_4 = arith.constant 0 : index
    %4 = vector.load %arg3[%c0_3, %c0_4] : memref<1x512xf32, #tpu.memory_space<vmem>>, vector<1x512xf32>
    %5 = vector.broadcast %4 : vector<1x512xf32> to vector<16x512xf32>
    %6 = arith.addf %3, %5 : vector<16x512xf32>
    %cst_5 = arith.constant 5.000000e-01 : f32
    %7 = vector.broadcast %cst_5 : f32 to vector<16x512xf32>
    %8 = arith.mulf %7, %6 : vector<16x512xf32>
    %cst_6 = arith.constant 0.707106769 : f32
    %9 = vector.broadcast %cst_6 : f32 to vector<16x512xf32>
    %10 = arith.mulf %6, %9 : vector<16x512xf32>
    %11 = math.absf %10 : vector<16x512xf32>
    %cst_7 = arith.constant 0.327591091 : f32
    %12 = vector.broadcast %cst_7 : f32 to vector<16x512xf32>
    %13 = arith.mulf %12, %11 : vector<16x512xf32>
    %cst_8 = arith.constant 1.000000e+00 : f32
    %14 = vector.broadcast %cst_8 : f32 to vector<16x512xf32>
    %15 = arith.addf %14, %13 : vector<16x512xf32>
    %16 = tpu.reciprocal %15 {approx = true} : vector<16x512xf32> -> vector<16x512xf32>
    %17 = arith.mulf %15, %16 : vector<16x512xf32>
    %cst_9 = arith.constant 2.000000e+00 : f32
    %18 = vector.broadcast %cst_9 : f32 to vector<16x512xf32>
    %19 = arith.subf %18, %17 : vector<16x512xf32>
    %20 = arith.mulf %16, %19 : vector<16x512xf32>
    %cst_10 = arith.constant 1.06140542 : f32
    %21 = vector.broadcast %cst_10 : f32 to vector<16x512xf32>
    %22 = arith.mulf %21, %20 : vector<16x512xf32>
    %cst_11 = arith.constant -1.45315206 : f32
    %23 = vector.broadcast %cst_11 : f32 to vector<16x512xf32>
    %24 = arith.addf %22, %23 : vector<16x512xf32>
    %25 = arith.mulf %24, %20 : vector<16x512xf32>
    %cst_12 = arith.constant 1.42141378 : f32
    %26 = vector.broadcast %cst_12 : f32 to vector<16x512xf32>
    %27 = arith.addf %25, %26 : vector<16x512xf32>
    %28 = arith.mulf %27, %20 : vector<16x512xf32>
    %cst_13 = arith.constant -0.284496725 : f32
    %29 = vector.broadcast %cst_13 : f32 to vector<16x512xf32>
    %30 = arith.addf %28, %29 : vector<16x512xf32>
    %31 = arith.mulf %30, %20 : vector<16x512xf32>
    %cst_14 = arith.constant 0.254829586 : f32
    %32 = vector.broadcast %cst_14 : f32 to vector<16x512xf32>
    %33 = arith.addf %31, %32 : vector<16x512xf32>
    %34 = arith.mulf %33, %20 : vector<16x512xf32>
    %cst_15 = arith.constant 0.000000e+00 : f32
    %35 = vector.broadcast %cst_15 : f32 to vector<16x512xf32>
    %36 = arith.subf %35, %11 : vector<16x512xf32>
    %37 = arith.mulf %36, %11 : vector<16x512xf32>
    %38 = math.exp %37 : vector<16x512xf32>
    %39 = arith.mulf %34, %38 : vector<16x512xf32>
    %cst_16 = arith.constant 1.000000e+00 : f32
    %40 = vector.broadcast %cst_16 : f32 to vector<16x512xf32>
    %41 = arith.subf %40, %39 : vector<16x512xf32>
    %cst_17 = arith.constant 0.000000e+00 : f32
    %42 = vector.broadcast %cst_17 : f32 to vector<16x512xf32>
    %43 = arith.cmpf oge, %10, %42 : vector<16x512xf32>
    %cst_18 = arith.constant 0.000000e+00 : f32
    %44 = vector.broadcast %cst_18 : f32 to vector<16x512xf32>
    %45 = arith.subf %44, %41 : vector<16x512xf32>
    %46 = arith.select %43, %41, %45 : vector<16x512xi1>, vector<16x512xf32>
    %47 = arith.mulf %8, %46 : vector<16x512xf32>
    %48 = arith.addf %8, %47 : vector<16x512xf32>
    %c0_19 = arith.constant 0 : index
    %c0_20 = arith.constant 0 : index
    %49 = vector.load %arg4[%c0_19, %c0_20] : memref<16x512xf32, #tpu.memory_space<vmem>>, vector<16x512xf32>
    tpu.vector_store %arg4[%c0_19, %c0_20], %48 {strides = array<i32>} : memref<16x512xf32, #tpu.memory_space<vmem>>, vector<16x512xf32>,
    return
  }
  func.func @transform_0(%arg0: i32) -> (i32, i32) {
    %c0_i32 = arith.constant 0 : i32
    %c0_i32_0 = arith.constant 0 : i32
    return %arg0, %c0_i32 : i32, i32
  }
  func.func @transform_1(%arg0: i32) -> (i32, i32) {
    %c0_i32 = arith.constant 0 : i32
    %c0_i32_0 = arith.constant 0 : i32
    %c0_i32_1 = arith.constant 0 : i32
    return %c0_i32, %c0_i32_0 : i32, i32
  }
  func.func @transform_2(%arg0: i32) -> (i32, i32) {
    %c0_i32 = arith.constant 0 : i32
    %c0_i32_0 = arith.constant 0 : i32
    %c0_i32_1 = arith.constant 0 : i32
    return %c0_i32, %c0_i32_0 : i32, i32
  }
  func.func @transform_3(%arg0: i32) -> (i32, i32) {
    %c0_i32 = arith.constant 0 : i32
    %c0_i32_0 = arith.constant 0 : i32
    return %arg0, %c0_i32 : i32, i32
  }
}

module attributes {stable_mosaic.version = 11 : i64} {
  func.func @bert_intermediate_kernel(%arg0: i32, %arg1: memref<16x128xf32, #tpu.memory_space<vmem>>, %arg2: memref<128x512xbf16, #tpu.memory_space<vmem>>, %arg3: memref<1x512xf32, #tpu.memory_space<vmem>>, %arg4: memref<16x512xf32, #tpu.memory_space<vmem>>) attributes {dimension_semantics = [#tpu.dimension_semantics<parallel>], iteration_bounds = array<i64: 1>, scalar_prefetch = 0 : i64, scratch_operands = 0 : i64, tpu.core_type = #tpu.core_type<tc>, window_params = [{transform_indices = @transform_0, window_bounds = array<i64: 16, 128>}, {pipeline_mode = #tpu.pipeline_mode<synchronous>, transform_indices = @transform_1, window_bounds = array<i64: 128, 512>}, {pipeline_mode = #tpu.pipeline_mode<synchronous>, transform_indices = @transform_2, window_bounds = array<i64: 1, 512>}, {transform_indices = @transform_3, window_bounds = array<i64: 16, 512>}]} {
    %c0 = arith.constant 0 : index
    %c0_0 = arith.constant 0 : index
    %0 = vector.load %arg1[%c0, %c0_0] : memref<16x128xf32, #tpu.memory_space<vmem>>, vector<16x128xf32>
    %1 = arith.truncf %0 : vector<16x128xf32> to vector<16x128xbf16>
    %c0_1 = arith.constant 0 : index
    %c0_2 = arith.constant 0 : index
    %2 = vector.load %arg2[%c0_1, %c0_2] : memref<128x512xbf16, #tpu.memory_space<vmem>>, vector<128x512xbf16>
    %cst = arith.constant dense<0.000000e+00> : vector<16x512xf32>
    %3 = tpu.matmul %1, %2, %cst {dimension_numbers = #tpu.dot_dimension_numbers<[1], [0], [0], [1], [0, 0, 1, 1], [], []>} : vector<16x128xbf16>, vector<128x512xbf16>, vector<16x512xf32> -> vector<16x512xf32>
    %c0_3 = arith.constant 0 : index
    %c0_4 = arith.constant 0 : index
    %4 = vector.load %arg3[%c0_3, %c0_4] : memref<1x512xf32, #tpu.memory_space<vmem>>, vector<1x512xf32>
    %5 = vector.broadcast %4 : vector<1x512xf32> to vector<16x512xf32>
    %6 = arith.addf %3, %5 : vector<16x512xf32>
    %cst_5 = arith.constant 5.000000e-01 : f32
    %7 = vector.broadcast %cst_5 : f32 to vector<16x512xf32>
    %8 = arith.mulf %7, %6 : vector<16x512xf32>
    %cst_6 = arith.constant 0.707106769 : f32
    %9 = vector.broadcast %cst_6 : f32 to vector<16x512xf32>
    %10 = arith.mulf %6, %9 : vector<16x512xf32>
    %11 = math.absf %10 : vector<16x512xf32>
    %cst_7 = arith.constant 0.327591091 : f32
    %12 = vector.broadcast %cst_7 : f32 to vector<16x512xf32>
    %13 = arith.mulf %12, %11 : vector<16x512xf32>
    %cst_8 = arith.constant 1.000000e+00 : f32
    %14 = vector.broadcast %cst_8 : f32 to vector<16x512xf32>
    %15 = arith.addf %14, %13 : vector<16x512xf32>
    %16 = tpu.reciprocal %15 {approx = true} : vector<16x512xf32> -> vector<16x512xf32>
    %17 = arith.mulf %15, %16 : vector<16x512xf32>
    %cst_9 = arith.constant 2.000000e+00 : f32
    %18 = vector.broadcast %cst_9 : f32 to vector<16x512xf32>
    %19 = arith.subf %18, %17 : vector<16x512xf32>
    %20 = arith.mulf %16, %19 : vector<16x512xf32>
    %cst_10 = arith.constant 1.06140542 : f32
    %21 = vector.broadcast %cst_10 : f32 to vector<16x512xf32>
    %22 = arith.mulf %21, %20 : vector<16x512xf32>
    %cst_11 = arith.constant -1.45315206 : f32
    %23 = vector.broadcast %cst_11 : f32 to vector<16x512xf32>
    %24 = arith.addf %22, %23 : vector<16x512xf32>
    %25 = arith.mulf %24, %20 : vector<16x512xf32>
    %cst_12 = arith.constant 1.42141378 : f32
    %26 = vector.broadcast %cst_12 : f32 to vector<16x512xf32>
    %27 = arith.addf %25, %26 : vector<16x512xf32>
    %28 = arith.mulf %27, %20 : vector<16x512xf32>
    %cst_13 = arith.constant -0.284496725 : f32
    %29 = vector.broadcast %cst_13 : f32 to vector<16x512xf32>
    %30 = arith.addf %28, %29 : vector<16x512xf32>
    %31 = arith.mulf %30, %20 : vector<16x512xf32>
    %cst_14 = arith.constant 0.254829586 : f32
    %32 = vector.broadcast %cst_14 : f32 to vector<16x512xf32>
    %33 = arith.addf %31, %32 : vector<16x512xf32>
    %34 = arith.mulf %33, %20 : vector<16x512xf32>
    %cst_15 = arith.constant 0.000000e+00 : f32
    %35 = vector.broadcast %cst_15 : f32 to vector<16x512xf32>
    %36 = arith.subf %35, %11 : vector<16x512xf32>
    %37 = arith.mulf %36, %11 : vector<16x512xf32>
    %38 = math.exp %37 : vector<16x512xf32>
    %39 = arith.mulf %34, %38 : vector<16x512xf32>
    %cst_16 = arith.constant 1.000000e+00 : f32
    %40 = vector.broadcast %cst_16 : f32 to vector<16x512xf32>
    %41 = arith.subf %40, %39 : vector<16x512xf32>
    %cst_17 = arith.constant 0.000000e+00 : f32
    %42 = vector.broadcast %cst_17 : f32 to vector<16x512xf32>
    %43 = arith.cmpf oge, %10, %42 : vector<16x512xf32>
    %cst_18 = arith.constant 0.000000e+00 : f32
    %44 = vector.broadcast %cst_18 : f32 to vector<16x512xf32>
    %45 = arith.subf %44, %41 : vector<16x512xf32>
    %46 = arith.select %43, %41, %45 : vector<16x512xi1>, vector<16x512xf32>
    %47 = arith.mulf %8, %46 : vector<16x512xf32>
    %48 = arith.addf %8, %47 : vector<16x512xf32>
    %c0_19 = arith.constant 0 : index
    %c0_20 = arith.constant 0 : index
    %49 = vector.load %arg4[%c0_19, %c0_20] : memref<16x512xf32, #tpu.memory_space<vmem>>, vector<16x512xf32>
    tpu.vector_store %arg4[%c0_19, %c0_20], %48 {strides = array<i32>} : memref<16x512xf32, #tpu.memory_space<vmem>>, vector<16x512xf32>,
    return
  }
  func.func @transform_0(%arg0: i32) -> (i32, i32) {
    %c0_i32 = arith.constant 0 : i32
    %c0_i32_0 = arith.constant 0 : i32
    return %arg0, %c0_i32 : i32, i32
  }
  func.func @transform_1(%arg0: i32) -> (i32, i32) {
    %c0_i32 = arith.constant 0 : i32
    %c0_i32_0 = arith.constant 0 : i32
    %c0_i32_1 = arith.constant 0 : i32
    return %c0_i32, %c0_i32_0 : i32, i32
  }
  func.func @transform_2(%arg0: i32) -> (i32, i32) {
    %c0_i32 = arith.constant 0 : i32
    %c0_i32_0 = arith.constant 0 : i32
    %c0_i32_1 = arith.constant 0 : i32
    return %c0_i32, %c0_i32_0 : i32, i32
  }
  func.func @transform_3(%arg0: i32) -> (i32, i32) {
    %c0_i32 = arith.constant 0 : i32
    %c0_i32_0 = arith.constant 0 : i32
    return %arg0, %c0_i32 : i32, i32
  }
}

</mosaic_0001>

<llo_original>
// kernel: tpu_custom_call.1
$region0: #{tpu_custom_call.1}
  #allocation0 [shape = 'u32[]', space=smem, size = 0x4, offset = 0x4, fixed_abs, tag = 'smem constant byte address 0x4 - core index']
  #allocation1 [shape = 'u32[144,128]{1,0:T(1,128)}', space=vmem, size = 0x12000, scoped, tag = 'internal scratch']
  %s0 = inlined_call_operand.hbm [shape: f32[16,128], index: 0, kind: input, shape index: {}]
  %s1 = inlined_call_operand.hbm [shape: bf16[128,512], index: 1, kind: input, shape index: {}]
  %s2 = inlined_call_operand.hbm [shape: f32[1,512], index: 2, kind: input, shape index: {}]
  %s3 = inlined_call_operand.hbm [shape: f32[16,512], index: 3, kind: output, shape index: {}]
  %s4 = sld [smem:[#allocation0]]
  $region34: #{tpu_custom_call.1} parent=0
    _
  %s6 = ssub.s32 1, %s4
  %s7 = scalar_select 0, %s6, %s4
  $region1: #{tpu_custom_call.1} parent=0
    #allocation2 [shape = 'u8[8192]{0}', space=vmem, size = 0x2000, scoped, tag = 'input window, operand 0, single buffered']
    #allocation3 [shape = 's32[1]{0}', space=sflag, size = 0x4, scoped, tag = 'scoped memory for tpu_custom_call.1']
    #allocation4 [shape = 's32[1]{0}', space=sflag, size = 0x4, scoped, tag = 'scoped memory for tpu_custom_call.1']
    #allocation5 [shape = 'u8[131072]{0}', space=vmem, size = 0x20000, scoped, tag = 'input window, operand 1, single buffered']
    #allocation6 [shape = 's32[1]{0}', space=sflag, size = 0x4, scoped, tag = 'scoped memory for tpu_custom_call.1']
    #allocation7 [shape = 'u8[2048]{0}', space=vmem, size = 0x800, scoped, tag = 'input window, operand 2, single buffered']
    #allocation8 [shape = 'u8[32768]{0}', space=vmem, size = 0x8000, scoped, tag = 'output window, operand 0, single buffered']
    %8 = vsyncpa [#allocation3], 0
    %9 = vsyncpa [#allocation6], 0
    %10 = vsyncpa [#allocation4], 0
    // Predicated region
    $region2: #{tpu_custom_call.1} parent=1 // pred_check
      _
    $region3: #{tpu_custom_call.1} parent=1 // pred_check_branch
      %12 = sbr.rel (0) target = $region5
    $region4: #{tpu_custom_call.1} parent=1 // pred_region
      %s14 = ssub.s32 256, 256
      %15 = vsyncadd [#allocation3], %s14
      %s16 = sshll.u32 [#allocation2], 4
      %s17 = int_to_ptr.vmem [resolvable:$true] %s16
      %22 = dma.hbm_to_vmem [thread:$0]  %s0, 256, %s17, [#allocation3], 128, 128, 8
    $region5: #{tpu_custom_call.1} parent=1 // pred_fallthru
      _
    // Predicated region
    $region6: #{tpu_custom_call.1} parent=1 // pred_check
      _
    $region7: #{tpu_custom_call.1} parent=1 // pred_check_branch
      %24 = sbr.rel (0) target = $region9
    $region8: #{tpu_custom_call.1} parent=1 // pred_region
      %s26 = ssub.s32 4096, 4096
      %27 = vsyncadd [#allocation6], %s26
      %s28 = sshll.u32 [#allocation5], 4
      %s29 = int_to_ptr.vmem [resolvable:$true] %s28
      %34 = dma.hbm_to_vmem [thread:$0]  %s1, 4096, %s29, [#allocation6], 256, 256, 16
    $region9: #{tpu_custom_call.1} parent=1 // pred_fallthru
      _
    // Predicated region
    $region10: #{tpu_custom_call.1} parent=1 // pred_check
      _
    $region11: #{tpu_custom_call.1} parent=1 // pred_check_branch
      %36 = sbr.rel (0) target = $region13
    $region12: #{tpu_custom_call.1} parent=1 // pred_region
      %s38 = ssub.s32 64, 64
      %39 = vsyncadd [#allocation6], %s38
      %s41 = sshll.u32 [#allocation7], 4
      %s42 = int_to_ptr.vmem [resolvable:$true] %s41
      %44 = dma.hbm_to_vmem [thread:$0]  %s2, 64, %s42, [#allocation6]
    $region13: #{tpu_custom_call.1} parent=1 // pred_fallthru
      _
    // Predicated region
    $region14: #{tpu_custom_call.1} parent=1 // pred_check
      _
    $region15: #{tpu_custom_call.1} parent=1 // pred_check_branch
      %46 = sbr.rel (0) target = $region17
    $region16: #{tpu_custom_call.1} parent=1 // pred_region
      %47 = dma.done [#allocation3], 256
    $region17: #{tpu_custom_call.1} parent=1 // pred_fallthru
      _
    // Predicated region
    $region18: #{tpu_custom_call.1} parent=1 // pred_check
      _
    $region19: #{tpu_custom_call.1} parent=1 // pred_check_branch
      %49 = sbr.rel (0) target = $region21
    $region20: #{tpu_custom_call.1} parent=1 // pred_region
      %50 = dma.done [#allocation6], 4096
    $region21: #{tpu_custom_call.1} parent=1 // pred_fallthru
      _
    // Predicated region
    $region22: #{tpu_custom_call.1} parent=1 // pred_check
      _
    $region23: #{tpu_custom_call.1} parent=1 // pred_check_branch
      %52 = sbr.rel (0) target = $region25
    $region24: #{tpu_custom_call.1} parent=1 // pred_region
      %53 = dma.done [#allocation6], 64
    $region25: #{tpu_custom_call.1} parent=1 // pred_fallthru
      _
    %v55 = vld [vmem:[#allocation2] sm:$0xff]
    %v56 = vld [vmem:[#allocation2 + $0x8] sm:$0xff]
    %v57 = vpack.c.bf16 %v56, %v55
    %v58 = vld [vmem:[#allocation5] sm:$0xff]
    %v59 = vld [vmem:[#allocation5 + $0x8] sm:$0xff]
    %v60 = vld [vmem:[#allocation5 + $0x10] sm:$0xff]
    %v61 = vld [vmem:[#allocation5 + $0x18] sm:$0xff]
    %v62 = vld [vmem:[#allocation5 + $0x20] sm:$0xff]
    %v63 = vld [vmem:[#allocation5 + $0x28] sm:$0xff]
    %v64 = vld [vmem:[#allocation5 + $0x30] sm:$0xff]
    %v65 = vld [vmem:[#allocation5 + $0x38] sm:$0xff]
    %v66 = vld [vmem:[#allocation5 + $0x40] sm:$0xff]
    %v67 = vld [vmem:[#allocation5 + $0x48] sm:$0xff]
    %v68 = vld [vmem:[#allocation5 + $0x50] sm:$0xff]
    %v69 = vld [vmem:[#allocation5 + $0x58] sm:$0xff]
    %v70 = vld [vmem:[#allocation5 + $0x60] sm:$0xff]
    %v71 = vld [vmem:[#allocation5 + $0x68] sm:$0xff]
    %v72 = vld [vmem:[#allocation5 + $0x70] sm:$0xff]
    %v73 = vld [vmem:[#allocation5 + $0x78] sm:$0xff]
    %v74 = vld [vmem:[#allocation5 + $0x80] sm:$0xff]
    %v75 = vld [vmem:[#allocation5 + $0x88] sm:$0xff]
    %v76 = vld [vmem:[#allocation5 + $0x90] sm:$0xff]
    %v77 = vld [vmem:[#allocation5 + $0x98] sm:$0xff]
    %v78 = vld [vmem:[#allocation5 + $0xa0] sm:$0xff]
    %v79 = vld [vmem:[#allocation5 + $0xa8] sm:$0xff]
    %v80 = vld [vmem:[#allocation5 + $0xb0] sm:$0xff]
    %v81 = vld [vmem:[#allocation5 + $0xb8] sm:$0xff]
    %v82 = vld [vmem:[#allocation5 + $0xc0] sm:$0xff]
    %v83 = vld [vmem:[#allocation5 + $0xc8] sm:$0xff]
    %v84 = vld [vmem:[#allocation5 + $0xd0] sm:$0xff]
    %v85 = vld [vmem:[#allocation5 + $0xd8] sm:$0xff]
    %v86 = vld [vmem:[#allocation5 + $0xe0] sm:$0xff]
    %v87 = vld [vmem:[#allocation5 + $0xe8] sm:$0xff]
    %v88 = vld [vmem:[#allocation5 + $0xf0] sm:$0xff]
    %v89 = vld [vmem:[#allocation5 + $0xf8] sm:$0xff]
    %v90 = vld [vmem:[#allocation7] sm:$0xf]
    %v92 = vlaneseq
    %v93 = vshrl.u32 %v92, 7
    %v94 = vsub.s32 0, %v93
    %v95 = vrot.slane %v90, %v94
    %v96 = vlaneseq
    %v97 = vshrl.u32 %v96, 7
    %v98 = vsub.s32 1, %v97
    %v99 = vrot.slane %v90, %v98
    %v100 = vlaneseq
    %v101 = vshrl.u32 %v100, 7
    %v102 = vsub.s32 2, %v101
    %v103 = vrot.slane %v90, %v102
    %v104 = vlaneseq
    %v105 = vshrl.u32 %v104, 7
    %v106 = vsub.s32 3, %v105
    %v107 = vrot.slane %v90, %v106
    %v144 = vunpack.c.l.b16 %v58
    %v145 = vunpack.c.h.b16 %v58
    %v146 = vunpack.c.l.b16 %v59
    %v147 = vunpack.c.h.b16 %v59
    %v148 = vunpack.c.l.b16 %v60
    %v149 = vunpack.c.h.b16 %v60
    %v150 = vunpack.c.l.b16 %v61
    %v151 = vunpack.c.h.b16 %v61
    %v152 = vunpack.c.l.b16 %v62
    %v153 = vunpack.c.h.b16 %v62
    %v154 = vunpack.c.l.b16 %v63
    %v155 = vunpack.c.h.b16 %v63
    %v156 = vunpack.c.l.b16 %v64
    %v157 = vunpack.c.h.b16 %v64
    %v158 = vunpack.c.l.b16 %v65
    %v159 = vunpack.c.h.b16 %v65
    %v160 = vunpack.c.l.b16 %v66
    %v161 = vunpack.c.h.b16 %v66
    %v162 = vunpack.c.l.b16 %v67
    %v163 = vunpack.c.h.b16 %v67
    %v164 = vunpack.c.l.b16 %v68
    %v165 = vunpack.c.h.b16 %v68
    %v166 = vunpack.c.l.b16 %v69
    %v167 = vunpack.c.h.b16 %v69
    %v168 = vunpack.c.l.b16 %v70
    %v169 = vunpack.c.h.b16 %v70
    %v170 = vunpack.c.l.b16 %v71
    %v171 = vunpack.c.h.b16 %v71
    %v172 = vunpack.c.l.b16 %v72
    %v173 = vunpack.c.h.b16 %v72
    %v174 = vunpack.c.l.b16 %v73
    %v175 = vunpack.c.h.b16 %v73
    %v176 = vunpack.c.l.b16 %v74
    %v177 = vunpack.c.h.b16 %v74
    %v178 = vunpack.c.l.b16 %v75
    %v179 = vunpack.c.h.b16 %v75
    %v180 = vunpack.c.l.b16 %v76
    %v181 = vunpack.c.h.b16 %v76
    %v182 = vunpack.c.l.b16 %v77
    %v183 = vunpack.c.h.b16 %v77
    %v184 = vunpack.c.l.b16 %v78
    %v185 = vunpack.c.h.b16 %v78
    %v186 = vunpack.c.l.b16 %v79
    %v187 = vunpack.c.h.b16 %v79
    %v188 = vunpack.c.l.b16 %v80
    %v189 = vunpack.c.h.b16 %v80
    %v190 = vunpack.c.l.b16 %v81
    %v191 = vunpack.c.h.b16 %v81
    %v192 = vunpack.c.l.b16 %v82
    %v193 = vunpack.c.h.b16 %v82
    %v194 = vunpack.c.l.b16 %v83
    %v195 = vunpack.c.h.b16 %v83
    %v196 = vunpack.c.l.b16 %v84
    %v197 = vunpack.c.h.b16 %v84
    %v198 = vunpack.c.l.b16 %v85
    %v199 = vunpack.c.h.b16 %v85
    %v200 = vunpack.c.l.b16 %v86
    %v201 = vunpack.c.h.b16 %v86
    %v202 = vunpack.c.l.b16 %v87
    %v203 = vunpack.c.h.b16 %v87
    %v204 = vunpack.c.l.b16 %v88
    %v205 = vunpack.c.h.b16 %v88
    %v206 = vunpack.c.l.b16 %v89
    %v207 = vunpack.c.h.b16 %v89
    %v208 = vpack.c.b16 %v148, %v144
    %v209 = vpack.c.b16 %v149, %v145
    %v210 = vpack.c.b16 %v150, %v146
    %v211 = vpack.c.b16 %v151, %v147
    %v212 = vpack.c.b16 %v156, %v152
    %v213 = vpack.c.b16 %v157, %v153
    %v214 = vpack.c.b16 %v158, %v154
    %v215 = vpack.c.b16 %v159, %v155
    %v216 = vpack.c.b16 %v164, %v160
    %v217 = vpack.c.b16 %v165, %v161
    %v218 = vpack.c.b16 %v166, %v162
    %v219 = vpack.c.b16 %v167, %v163
    %v220 = vpack.c.b16 %v172, %v168
    %v221 = vpack.c.b16 %v173, %v169
    %v222 = vpack.c.b16 %v174, %v170
    %v223 = vpack.c.b16 %v175, %v171
    %v224 = vpack.c.b16 %v180, %v176
    %v225 = vpack.c.b16 %v181, %v177
    %v226 = vpack.c.b16 %v182, %v178
    %v227 = vpack.c.b16 %v183, %v179
    %v228 = vpack.c.b16 %v188, %v184
    %v229 = vpack.c.b16 %v189, %v185
    %v230 = vpack.c.b16 %v190, %v186
    %v231 = vpack.c.b16 %v191, %v187
    %v232 = vpack.c.b16 %v196, %v192
    %v233 = vpack.c.b16 %v197, %v193
    %v234 = vpack.c.b16 %v198, %v194
    %v235 = vpack.c.b16 %v199, %v195
    %v236 = vpack.c.b16 %v204, %v200
    %v237 = vpack.c.b16 %v205, %v201
    %v238 = vpack.c.b16 %v206, %v202
    %v239 = vpack.c.b16 %v207, %v203
    %272 = vmatprep.subr.bf16.mxu0 %v237
    %273 = vmatpush1.bf16.msra.mxu0 %v236
    %274 = vmatprep.subr.bf16.mxu0 %v233
    %275 = vmatpush1.bf16.msra.mxu0 %v232
    %276 = vmatprep.subr.bf16.mxu0 %v229
    %277 = vmatpush1.bf16.msra.mxu0 %v228
    %278 = vmatprep.subr.bf16.mxu0 %v225
    %279 = vmatpush1.bf16.msra.mxu0 %v224
    %280 = vmatprep.subr.bf16.mxu0 %v221
    %281 = vmatpush1.bf16.msra.mxu0 %v220
    %282 = vmatprep.subr.bf16.mxu0 %v217
    %283 = vmatpush1.bf16.msra.mxu0 %v216
    %284 = vmatprep.subr.bf16.mxu0 %v213
    %285 = vmatpush1.bf16.msra.mxu0 %v212
    %286 = vmatprep.subr.bf16.mxu0 %v209
    %287 = vmatpush1.bf16.msra.mxu0 %v208
    %288 = vmatprep.subr.bf16.mxu0 0
    %289 = vmatpush2.bf16.msra.mxu0 0
    %290 = vmatprep.subr.bf16.mxu0 0
    %291 = vmatpush2.bf16.msra.mxu0 0
    %292 = vmatprep.subr.bf16.mxu0 0
    %293 = vmatpush2.bf16.msra.mxu0 0
    %294 = vmatprep.subr.bf16.mxu0 0
    %295 = vmatpush2.bf16.msra.mxu0 0
    %296 = vmatprep.subr.bf16.mxu0 0
    %297 = vmatpush2.bf16.msra.mxu0 0
    %298 = vmatprep.subr.bf16.mxu0 0
    %299 = vmatpush2.bf16.msra.mxu0 0
    %300 = vmatprep.subr.bf16.mxu0 0
    %301 = vmatpush2.bf16.msra.mxu0 0
    %302 = vmatprep.subr.bf16.mxu0 0
    %303 = vmatpush2.bf16.msra.mxu0 0
    %304 = vmatprep.mubr.bf16.mxu0 0
    %305 = vmatmul.mubr.bf16.gmra.mxu0 %v57
    %v306 = vpop.f32.mrf.mxu0
    %v307 = vadd.f32 %v95, %v306
    %v308 = vpop.f32.mrf.mxu0
    %v309 = vadd.f32 %v99, %v308
    %v310 = vpop.f32.mrf.mxu0
    %v311 = vadd.f32 %v95, %v310
    %v312 = vpop.f32.mrf.mxu0
    %v313 = vadd.f32 %v99, %v312
    %314 = vdwg.mxu0
    %315 = vmatprep.subr.bf16.mxu0 %v239
    %316 = vmatpush1.bf16.msra.mxu0 %v238
    %317 = vmatprep.subr.bf16.mxu0 %v235
    %318 = vmatpush1.bf16.msra.mxu0 %v234
    %319 = vmatprep.subr.bf16.mxu0 %v231
    %320 = vmatpush1.bf16.msra.mxu0 %v230
    %321 = vmatprep.subr.bf16.mxu0 %v227
    %322 = vmatpush1.bf16.msra.mxu0 %v226
    %323 = vmatprep.subr.bf16.mxu0 %v223
    %324 = vmatpush1.bf16.msra.mxu0 %v222
    %325 = vmatprep.subr.bf16.mxu0 %v219
    %326 = vmatpush1.bf16.msra.mxu0 %v218
    %327 = vmatprep.subr.bf16.mxu0 %v215
    %328 = vmatpush1.bf16.msra.mxu0 %v214
    %329 = vmatprep.subr.bf16.mxu0 %v211
    %330 = vmatpush1.bf16.msra.mxu0 %v210
    %331 = vmatprep.subr.bf16.mxu0 0
    %332 = vmatpush2.bf16.msra.mxu0 0
    %333 = vmatprep.subr.bf16.mxu0 0
    %334 = vmatpush2.bf16.msra.mxu0 0
    %335 = vmatprep.subr.bf16.mxu0 0
    %336 = vmatpush2.bf16.msra.mxu0 0
    %337 = vmatprep.subr.bf16.mxu0 0
    %338 = vmatpush2.bf16.msra.mxu0 0
    %339 = vmatprep.subr.bf16.mxu0 0
    %340 = vmatpush2.bf16.msra.mxu0 0
    %341 = vmatprep.subr.bf16.mxu0 0
    %342 = vmatpush2.bf16.msra.mxu0 0
    %343 = vmatprep.subr.bf16.mxu0 0
    %344 = vmatpush2.bf16.msra.mxu0 0
    %345 = vmatprep.subr.bf16.mxu0 0
    %346 = vmatpush2.bf16.msra.mxu0 0
    %347 = vmatprep.mubr.bf16.mxu0 0
    %348 = vmatmul.mubr.bf16.gmra.mxu0 %v57
    %v349 = vpop.f32.mrf.mxu0
    %v350 = vadd.f32 %v103, %v349
    %v351 = vpop.f32.mrf.mxu0
    %v352 = vadd.f32 %v107, %v351
    %v353 = vpop.f32.mrf.mxu0
    %v354 = vadd.f32 %v103, %v353
    %v355 = vpop.f32.mrf.mxu0
    %v356 = vadd.f32 %v107, %v355
    %357 = vdwg.mxu0
    %v358 = vmul.f32 %v307, 0.5
    %v359 = vmul.f32 %v309, 0.5
    %v360 = vmul.f32 %v350, 0.5
    %v361 = vmul.f32 %v352, 0.5
    %v362 = vmul.f32 %v311, 0.5
    %v363 = vmul.f32 %v313, 0.5
    %v364 = vmul.f32 %v354, 0.5
    %v365 = vmul.f32 %v356, 0.5
    %v366 = vmul.f32 %v307, 0.70710677
    %v367 = vmul.f32 %v309, 0.70710677
    %v368 = vmul.f32 %v350, 0.70710677
    %v369 = vmul.f32 %v352, 0.70710677
    %v370 = vmul.f32 %v311, 0.70710677
    %v371 = vmul.f32 %v313, 0.70710677
    %v372 = vmul.f32 %v354, 0.70710677
    %v373 = vmul.f32 %v356, 0.70710677
    %v374 = vand.u32 2147483647, %v366
    %v375 = vand.u32 2147483647, %v367
    %v376 = vand.u32 2147483647, %v368
    %v377 = vand.u32 2147483647, %v369
    %v378 = vand.u32 2147483647, %v370
    %v379 = vand.u32 2147483647, %v371
    %v380 = vand.u32 2147483647, %v372
    %v381 = vand.u32 2147483647, %v373
    %v382 = vmul.f32 %v374, 0.3275911
    %v383 = vmul.f32 %v375, 0.3275911
    %v384 = vmul.f32 %v376, 0.3275911
    %v385 = vmul.f32 %v377, 0.3275911
    %v386 = vmul.f32 %v378, 0.3275911
    %v387 = vmul.f32 %v379, 0.3275911
    %v388 = vmul.f32 %v380, 0.3275911
    %v389 = vmul.f32 %v381, 0.3275911
    %v390 = vadd.f32 %v382, 1.0
    %v391 = vadd.f32 %v383, 1.0
    %v392 = vadd.f32 %v384, 1.0
    %v393 = vadd.f32 %v385, 1.0
    %v394 = vadd.f32 %v386, 1.0
    %v395 = vadd.f32 %v387, 1.0
    %v396 = vadd.f32 %v388, 1.0
    %v397 = vadd.f32 %v389, 1.0
    %v398 = vrcp.pop %v390
    %v399 = vrcp.pop %v391
    %v400 = vrcp.pop %v392
    %v401 = vrcp.pop %v393
    %v402 = vrcp.pop %v394
    %v403 = vrcp.pop %v395
    %v404 = vrcp.pop %v396
    %v405 = vrcp.pop %v397
    %v406 = vmul.f32 %v390, %v398
    %v407 = vmul.f32 %v391, %v399
    %v408 = vmul.f32 %v392, %v400
    %v409 = vmul.f32 %v393, %v401
    %v410 = vmul.f32 %v394, %v402
    %v411 = vmul.f32 %v395, %v403
    %v412 = vmul.f32 %v396, %v404
    %v413 = vmul.f32 %v397, %v405
    %v414 = vsub.f32 2.0, %v406
    %v415 = vsub.f32 2.0, %v407
    %v416 = vsub.f32 2.0, %v408
    %v417 = vsub.f32 2.0, %v409
    %v418 = vsub.f32 2.0, %v410
    %v419 = vsub.f32 2.0, %v411
    %v420 = vsub.f32 2.0, %v412
    %v421 = vsub.f32 2.0, %v413
    %v422 = vmul.f32 %v398, %v414
    %v423 = vmul.f32 %v399, %v415
    %v424 = vmul.f32 %v400, %v416
    %v425 = vmul.f32 %v401, %v417
    %v426 = vmul.f32 %v402, %v418
    %v427 = vmul.f32 %v403, %v419
    %v428 = vmul.f32 %v404, %v420
    %v429 = vmul.f32 %v405, %v421
    %v430 = vmul.f32 %v422, 1.0614054
    %v431 = vmul.f32 %v423, 1.0614054
    %v432 = vmul.f32 %v424, 1.0614054
    %v433 = vmul.f32 %v425, 1.0614054
    %v434 = vmul.f32 %v426, 1.0614054
    %v435 = vmul.f32 %v427, 1.0614054
    %v436 = vmul.f32 %v428, 1.0614054
    %v437 = vmul.f32 %v429, 1.0614054
    %v438 = vadd.f32 %v430, -1.4531521
    %v439 = vadd.f32 %v431, -1.4531521
    %v440 = vadd.f32 %v432, -1.4531521
    %v441 = vadd.f32 %v433, -1.4531521
    %v442 = vadd.f32 %v434, -1.4531521
    %v443 = vadd.f32 %v435, -1.4531521
    %v444 = vadd.f32 %v436, -1.4531521
    %v445 = vadd.f32 %v437, -1.4531521
    %v446 = vmul.f32 %v438, %v422
    %v447 = vmul.f32 %v439, %v423
    %v448 = vmul.f32 %v440, %v424
    %v449 = vmul.f32 %v441, %v425
    %v450 = vmul.f32 %v442, %v426
    %v451 = vmul.f32 %v443, %v427
    %v452 = vmul.f32 %v444, %v428
    %v453 = vmul.f32 %v445, %v429
    %v454 = vadd.f32 %v446, 1.4214138
    %v455 = vadd.f32 %v447, 1.4214138
    %v456 = vadd.f32 %v448, 1.4214138
    %v457 = vadd.f32 %v449, 1.4214138
    %v458 = vadd.f32 %v450, 1.4214138
    %v459 = vadd.f32 %v451, 1.4214138
    %v460 = vadd.f32 %v452, 1.4214138
    %v461 = vadd.f32 %v453, 1.4214138
    %v462 = vmul.f32 %v454, %v422
    %v463 = vmul.f32 %v455, %v423
    %v464 = vmul.f32 %v456, %v424
    %v465 = vmul.f32 %v457, %v425
    %v466 = vmul.f32 %v458, %v426
    %v467 = vmul.f32 %v459, %v427
    %v468 = vmul.f32 %v460, %v428
    %v469 = vmul.f32 %v461, %v429
    %v470 = vadd.f32 %v462, -0.28449672
    %v471 = vadd.f32 %v463, -0.28449672
    %v472 = vadd.f32 %v464, -0.28449672
    %v473 = vadd.f32 %v465, -0.28449672
    %v474 = vadd.f32 %v466, -0.28449672
    %v475 = vadd.f32 %v467, -0.28449672
    %v476 = vadd.f32 %v468, -0.28449672
    %v477 = vadd.f32 %v469, -0.28449672
    %v478 = vmul.f32 %v470, %v422
    %v479 = vmul.f32 %v471, %v423
    %v480 = vmul.f32 %v472, %v424
    %v481 = vmul.f32 %v473, %v425
    %v482 = vmul.f32 %v474, %v426
    %v483 = vmul.f32 %v475, %v427
    %v484 = vmul.f32 %v476, %v428
    %v485 = vmul.f32 %v477, %v429
    %v486 = vadd.f32 %v478, 0.2548296
    %v487 = vadd.f32 %v479, 0.2548296
    %v488 = vadd.f32 %v480, 0.2548296
    %v489 = vadd.f32 %v481, 0.2548296
    %v490 = vadd.f32 %v482, 0.2548296
    %v491 = vadd.f32 %v483, 0.2548296
    %v492 = vadd.f32 %v484, 0.2548296
    %v493 = vadd.f32 %v485, 0.2548296
    %v494 = vmul.f32 %v486, %v422
    %v495 = vmul.f32 %v487, %v423
    %v496 = vmul.f32 %v488, %v424
    %v497 = vmul.f32 %v489, %v425
    %v498 = vmul.f32 %v490, %v426
    %v499 = vmul.f32 %v491, %v427
    %v500 = vmul.f32 %v492, %v428
    %v501 = vmul.f32 %v493, %v429
    %v502 = vsub.f32 0.0, %v374
    %v503 = vsub.f32 0.0, %v375
    %v504 = vsub.f32 0.0, %v376
    %v505 = vsub.f32 0.0, %v377
    %v506 = vsub.f32 0.0, %v378
    %v507 = vsub.f32 0.0, %v379
    %v508 = vsub.f32 0.0, %v380
    %v509 = vsub.f32 0.0, %v381
    %v510 = vmul.f32 %v502, %v374
    %v511 = vmul.f32 %v503, %v375
    %v512 = vmul.f32 %v504, %v376
    %v513 = vmul.f32 %v505, %v377
    %v514 = vmul.f32 %v506, %v378
    %v515 = vmul.f32 %v507, %v379
    %v516 = vmul.f32 %v508, %v380
    %v517 = vmul.f32 %v509, %v381
    %v518 = vmul.f32 %v510, 1.442695
    %v519 = vpow.pop %v518
    %v520 = vmul.f32 %v511, 1.442695
    %v521 = vpow.pop %v520
    %v522 = vmul.f32 %v512, 1.442695
    %v523 = vpow.pop %v522
    %v524 = vmul.f32 %v513, 1.442695
    %v525 = vpow.pop %v524
    %v526 = vmul.f32 %v514, 1.442695
    %v527 = vpow.pop %v526
    %v528 = vmul.f32 %v515, 1.442695
    %v529 = vpow.pop %v528
    %v530 = vmul.f32 %v516, 1.442695
    %v531 = vpow.pop %v530
    %v532 = vmul.f32 %v517, 1.442695
    %v533 = vpow.pop %v532
    %v534 = vmul.f32 %v494, %v519
    %v535 = vmul.f32 %v495, %v521
    %v536 = vmul.f32 %v496, %v523
    %v537 = vmul.f32 %v497, %v525
    %v538 = vmul.f32 %v498, %v527
    %v539 = vmul.f32 %v499, %v529
    %v540 = vmul.f32 %v500, %v531
    %v541 = vmul.f32 %v501, %v533
    %v542 = vsub.f32 1.0, %v534
    %v543 = vsub.f32 1.0, %v535
    %v544 = vsub.f32 1.0, %v536
    %v545 = vsub.f32 1.0, %v537
    %v546 = vsub.f32 1.0, %v538
    %v547 = vsub.f32 1.0, %v539
    %v548 = vsub.f32 1.0, %v540
    %v549 = vsub.f32 1.0, %v541
    %vm550 = vcmp.ge.f32.partialorder %v366, 0.0
    %vm551 = vcmp.ge.f32.partialorder %v367, 0.0
    %vm552 = vcmp.ge.f32.partialorder %v368, 0.0
    %vm553 = vcmp.ge.f32.partialorder %v369, 0.0
    %vm554 = vcmp.ge.f32.partialorder %v370, 0.0
    %vm555 = vcmp.ge.f32.partialorder %v371, 0.0
    %vm556 = vcmp.ge.f32.partialorder %v372, 0.0
    %vm557 = vcmp.ge.f32.partialorder %v373, 0.0
    %v558 = vsub.f32 0.0, %v542
    %v559 = vsub.f32 0.0, %v543
    %v560 = vsub.f32 0.0, %v544
    %v561 = vsub.f32 0.0, %v545
    %v562 = vsub.f32 0.0, %v546
    %v563 = vsub.f32 0.0, %v547
    %v564 = vsub.f32 0.0, %v548
    %v565 = vsub.f32 0.0, %v549
    %v566 = vsel %vm550, %v542, %v558
    %v567 = vsel %vm551, %v543, %v559
    %v568 = vsel %vm552, %v544, %v560
    %v569 = vsel %vm553, %v545, %v561
    %v570 = vsel %vm554, %v546, %v562
    %v571 = vsel %vm555, %v547, %v563
    %v572 = vsel %vm556, %v548, %v564
    %v573 = vsel %vm557, %v549, %v565
    %v574 = vmul.f32 %v358, %v566
    %v575 = vmul.f32 %v359, %v567
    %v576 = vmul.f32 %v360, %v568
    %v577 = vmul.f32 %v361, %v569
    %v578 = vmul.f32 %v362, %v570
    %v579 = vmul.f32 %v363, %v571
    %v580 = vmul.f32 %v364, %v572
    %v581 = vmul.f32 %v365, %v573
    %v582 = vadd.f32 %v358, %v574
    %v583 = vadd.f32 %v359, %v575
    %v584 = vadd.f32 %v360, %v576
    %v585 = vadd.f32 %v361, %v577
    %v586 = vadd.f32 %v362, %v578
    %v587 = vadd.f32 %v363, %v579
    %v588 = vadd.f32 %v364, %v580
    %v589 = vadd.f32 %v365, %v581
    %590 = vst [vmem:[#allocation8] sm:$0xff] %v582
    %591 = vst [vmem:[#allocation8 + $0x8] sm:$0xff] %v583
    %592 = vst [vmem:[#allocation8 + $0x10] sm:$0xff] %v584
    %593 = vst [vmem:[#allocation8 + $0x18] sm:$0xff] %v585
    %594 = vst [vmem:[#allocation8 + $0x20] sm:$0xff] %v586
    %595 = vst [vmem:[#allocation8 + $0x28] sm:$0xff] %v587
    %596 = vst [vmem:[#allocation8 + $0x30] sm:$0xff] %v588
    %597 = vst [vmem:[#allocation8 + $0x38] sm:$0xff] %v589
    // Predicated region
    $region26: #{tpu_custom_call.1} parent=1 // pred_check
      _
    $region27: #{tpu_custom_call.1} parent=1 // pred_check_branch
      %599 = sbr.rel (0) target = $region29
    $region28: #{tpu_custom_call.1} parent=1 // pred_region
      %s601 = ssub.s32 1024, 1024
      %602 = vsyncadd [#allocation4], %s601
      %s603 = sshll.u32 [#allocation8], 4
      %s604 = int_to_ptr.vmem [resolvable:$true] %s603
      %609 = dma.vmem_to_hbm [thread:$0]  %s604, 1024, %s3, [#allocation4], 512, 512, 32
    $region29: #{tpu_custom_call.1} parent=1 // pred_fallthru
      _
    // Predicated region
    $region30: #{tpu_custom_call.1} parent=1 // pred_check
      _
    $region31: #{tpu_custom_call.1} parent=1 // pred_check_branch
      %611 = sbr.rel (0) target = $region33
    $region32: #{tpu_custom_call.1} parent=1 // pred_region
      %612 = dma.done [#allocation4], 1024
    $region33: #{tpu_custom_call.1} parent=1 // pred_fallthru
      _
    %613 = vsyncpa [#allocation3], 1
    %614 = vsyncpa [#allocation6], 1
    %615 = vsyncpa [#allocation4], 1

// kernel: tpu_custom_call.1
$region0: #{tpu_custom_call.1}
  #allocation0 [shape = 'u32[]', space=smem, size = 0x4, offset = 0x4, fixed_abs, tag = 'smem constant byte address 0x4 - core index']
  #allocation1 [shape = 'u32[144,128]{1,0:T(1,128)}', space=vmem, size = 0x12000, scoped, tag = 'internal scratch']
  %s0 = inlined_call_operand.hbm [shape: f32[16,128], index: 0, kind: input, shape index: {}]
  %s1 = inlined_call_operand.hbm [shape: bf16[128,512], index: 1, kind: input, shape index: {}]
  %s2 = inlined_call_operand.hbm [shape: f32[1,512], index: 2, kind: input, shape index: {}]
  %s3 = inlined_call_operand.hbm [shape: f32[16,512], index: 3, kind: output, shape index: {}]
  %s4 = sld [smem:[#allocation0]]
  $region34: #{tpu_custom_call.1} parent=0
    _
  %s6 = ssub.s32 1, %s4
  %s7 = scalar_select 0, %s6, %s4
  $region1: #{tpu_custom_call.1} parent=0
    #allocation2 [shape = 'u8[8192]{0}', space=vmem, size = 0x2000, scoped, tag = 'input window, operand 0, single buffered']
    #allocation3 [shape = 's32[1]{0}', space=sflag, size = 0x4, scoped, tag = 'scoped memory for tpu_custom_call.1']
    #allocation4 [shape = 's32[1]{0}', space=sflag, size = 0x4, scoped, tag = 'scoped memory for tpu_custom_call.1']
    #allocation5 [shape = 'u8[131072]{0}', space=vmem, size = 0x20000, scoped, tag = 'input window, operand 1, single buffered']
    #allocation6 [shape = 's32[1]{0}', space=sflag, size = 0x4, scoped, tag = 'scoped memory for tpu_custom_call.1']
    #allocation7 [shape = 'u8[2048]{0}', space=vmem, size = 0x800, scoped, tag = 'input window, operand 2, single buffered']
    #allocation8 [shape = 'u8[32768]{0}', space=vmem, size = 0x8000, scoped, tag = 'output window, operand 0, single buffered']
    %8 = vsyncpa [#allocation3], 0
    %9 = vsyncpa [#allocation6], 0
    %10 = vsyncpa [#allocation4], 0
    // Predicated region
    $region2: #{tpu_custom_call.1} parent=1 // pred_check
      _
    $region3: #{tpu_custom_call.1} parent=1 // pred_check_branch
      %12 = sbr.rel (0) target = $region5
    $region4: #{tpu_custom_call.1} parent=1 // pred_region
      %s14 = ssub.s32 256, 256
      %15 = vsyncadd [#allocation3], %s14
      %s16 = sshll.u32 [#allocation2], 4
      %s17 = int_to_ptr.vmem [resolvable:$true] %s16
      %22 = dma.hbm_to_vmem [thread:$0]  %s0, 256, %s17, [#allocation3], 128, 128, 8
    $region5: #{tpu_custom_call.1} parent=1 // pred_fallthru
      _
    // Predicated region
    $region6: #{tpu_custom_call.1} parent=1 // pred_check
      _
    $region7: #{tpu_custom_call.1} parent=1 // pred_check_branch
      %24 = sbr.rel (0) target = $region9
    $region8: #{tpu_custom_call.1} parent=1 // pred_region
      %s26 = ssub.s32 4096, 4096
      %27 = vsyncadd [#allocation6], %s26
      %s28 = sshll.u32 [#allocation5], 4
      %s29 = int_to_ptr.vmem [resolvable:$true] %s28
      %34 = dma.hbm_to_vmem [thread:$0]  %s1, 4096, %s29, [#allocation6], 256, 256, 16
    $region9: #{tpu_custom_call.1} parent=1 // pred_fallthru
      _
    // Predicated region
    $region10: #{tpu_custom_call.1} parent=1 // pred_check
      _
    $region11: #{tpu_custom_call.1} parent=1 // pred_check_branch
      %36 = sbr.rel (0) target = $region13
    $region12: #{tpu_custom_call.1} parent=1 // pred_region
      %s38 = ssub.s32 64, 64
      %39 = vsyncadd [#allocation6], %s38
      %s41 = sshll.u32 [#allocation7], 4
      %s42 = int_to_ptr.vmem [resolvable:$true] %s41
      %44 = dma.hbm_to_vmem [thread:$0]  %s2, 64, %s42, [#allocation6]
    $region13: #{tpu_custom_call.1} parent=1 // pred_fallthru
      _
    // Predicated region
    $region14: #{tpu_custom_call.1} parent=1 // pred_check
      _
    $region15: #{tpu_custom_call.1} parent=1 // pred_check_branch
      %46 = sbr.rel (0) target = $region17
    $region16: #{tpu_custom_call.1} parent=1 // pred_region
      %47 = dma.done [#allocation3], 256
    $region17: #{tpu_custom_call.1} parent=1 // pred_fallthru
      _
    // Predicated region
    $region18: #{tpu_custom_call.1} parent=1 // pred_check
      _
    $region19: #{tpu_custom_call.1} parent=1 // pred_check_branch
      %49 = sbr.rel (0) target = $region21
    $region20: #{tpu_custom_call.1} parent=1 // pred_region
      %50 = dma.done [#allocation6], 4096
    $region21: #{tpu_custom_call.1} parent=1 // pred_fallthru
      _
    // Predicated region
    $region22: #{tpu_custom_call.1} parent=1 // pred_check
      _
    $region23: #{tpu_custom_call.1} parent=1 // pred_check_branch
      %52 = sbr.rel (0) target = $region25
    $region24: #{tpu_custom_call.1} parent=1 // pred_region
      %53 = dma.done [#allocation6], 64
    $region25: #{tpu_custom_call.1} parent=1 // pred_fallthru
      _
    %v55 = vld [vmem:[#allocation2] sm:$0xff]
    %v56 = vld [vmem:[#allocation2 + $0x8] sm:$0xff]
    %v57 = vpack.c.bf16 %v56, %v55
    %v58 = vld [vmem:[#allocation5] sm:$0xff]
    %v59 = vld [vmem:[#allocation5 + $0x8] sm:$0xff]
    %v60 = vld [vmem:[#allocation5 + $0x10] sm:$0xff]
    %v61 = vld [vmem:[#allocation5 + $0x18] sm:$0xff]
    %v62 = vld [vmem:[#allocation5 + $0x20] sm:$0xff]
    %v63 = vld [vmem:[#allocation5 + $0x28] sm:$0xff]
    %v64 = vld [vmem:[#allocation5 + $0x30] sm:$0xff]
    %v65 = vld [vmem:[#allocation5 + $0x38] sm:$0xff]
    %v66 = vld [vmem:[#allocation5 + $0x40] sm:$0xff]
    %v67 = vld [vmem:[#allocation5 + $0x48] sm:$0xff]
    %v68 = vld [vmem:[#allocation5 + $0x50] sm:$0xff]
    %v69 = vld [vmem:[#allocation5 + $0x58] sm:$0xff]
    %v70 = vld [vmem:[#allocation5 + $0x60] sm:$0xff]
    %v71 = vld [vmem:[#allocation5 + $0x68] sm:$0xff]
    %v72 = vld [vmem:[#allocation5 + $0x70] sm:$0xff]
    %v73 = vld [vmem:[#allocation5 + $0x78] sm:$0xff]
    %v74 = vld [vmem:[#allocation5 + $0x80] sm:$0xff]
    %v75 = vld [vmem:[#allocation5 + $0x88] sm:$0xff]
    %v76 = vld [vmem:[#allocation5 + $0x90] sm:$0xff]
    %v77 = vld [vmem:[#allocation5 + $0x98] sm:$0xff]
    %v78 = vld [vmem:[#allocation5 + $0xa0] sm:$0xff]
    %v79 = vld [vmem:[#allocation5 + $0xa8] sm:$0xff]
    %v80 = vld [vmem:[#allocation5 + $0xb0] sm:$0xff]
    %v81 = vld [vmem:[#allocation5 + $0xb8] sm:$0xff]
    %v82 = vld [vmem:[#allocation5 + $0xc0] sm:$0xff]
    %v83 = vld [vmem:[#allocation5 + $0xc8] sm:$0xff]
    %v84 = vld [vmem:[#allocation5 + $0xd0] sm:$0xff]
    %v85 = vld [vmem:[#allocation5 + $0xd8] sm:$0xff]
    %v86 = vld [vmem:[#allocation5 + $0xe0] sm:$0xff]
    %v87 = vld [vmem:[#allocation5 + $0xe8] sm:$0xff]
    %v88 = vld [vmem:[#allocation5 + $0xf0] sm:$0xff]
    %v89 = vld [vmem:[#allocation5 + $0xf8] sm:$0xff]
    %v90 = vld [vmem:[#allocation7] sm:$0xf]
    %v92 = vlaneseq
    %v93 = vshrl.u32 %v92, 7
    %v94 = vsub.s32 0, %v93
    %v95 = vrot.slane %v90, %v94
    %v96 = vlaneseq
    %v97 = vshrl.u32 %v96, 7
    %v98 = vsub.s32 1, %v97
    %v99 = vrot.slane %v90, %v98
    %v100 = vlaneseq
    %v101 = vshrl.u32 %v100, 7
    %v102 = vsub.s32 2, %v101
    %v103 = vrot.slane %v90, %v102
    %v104 = vlaneseq
    %v105 = vshrl.u32 %v104, 7
    %v106 = vsub.s32 3, %v105
    %v107 = vrot.slane %v90, %v106
    %v144 = vunpack.c.l.b16 %v58
    %v145 = vunpack.c.h.b16 %v58
    %v146 = vunpack.c.l.b16 %v59
    %v147 = vunpack.c.h.b16 %v59
    %v148 = vunpack.c.l.b16 %v60
    %v149 = vunpack.c.h.b16 %v60
    %v150 = vunpack.c.l.b16 %v61
    %v151 = vunpack.c.h.b16 %v61
    %v152 = vunpack.c.l.b16 %v62
    %v153 = vunpack.c.h.b16 %v62
    %v154 = vunpack.c.l.b16 %v63
    %v155 = vunpack.c.h.b16 %v63
    %v156 = vunpack.c.l.b16 %v64
    %v157 = vunpack.c.h.b16 %v64
    %v158 = vunpack.c.l.b16 %v65
    %v159 = vunpack.c.h.b16 %v65
    %v160 = vunpack.c.l.b16 %v66
    %v161 = vunpack.c.h.b16 %v66
    %v162 = vunpack.c.l.b16 %v67
    %v163 = vunpack.c.h.b16 %v67
    %v164 = vunpack.c.l.b16 %v68
    %v165 = vunpack.c.h.b16 %v68
    %v166 = vunpack.c.l.b16 %v69
    %v167 = vunpack.c.h.b16 %v69
    %v168 = vunpack.c.l.b16 %v70
    %v169 = vunpack.c.h.b16 %v70
    %v170 = vunpack.c.l.b16 %v71
    %v171 = vunpack.c.h.b16 %v71
    %v172 = vunpack.c.l.b16 %v72
    %v173 = vunpack.c.h.b16 %v72
    %v174 = vunpack.c.l.b16 %v73
    %v175 = vunpack.c.h.b16 %v73
    %v176 = vunpack.c.l.b16 %v74
    %v177 = vunpack.c.h.b16 %v74
    %v178 = vunpack.c.l.b16 %v75
    %v179 = vunpack.c.h.b16 %v75
    %v180 = vunpack.c.l.b16 %v76
    %v181 = vunpack.c.h.b16 %v76
    %v182 = vunpack.c.l.b16 %v77
    %v183 = vunpack.c.h.b16 %v77
    %v184 = vunpack.c.l.b16 %v78
    %v185 = vunpack.c.h.b16 %v78
    %v186 = vunpack.c.l.b16 %v79
    %v187 = vunpack.c.h.b16 %v79
    %v188 = vunpack.c.l.b16 %v80
    %v189 = vunpack.c.h.b16 %v80
    %v190 = vunpack.c.l.b16 %v81
    %v191 = vunpack.c.h.b16 %v81
    %v192 = vunpack.c.l.b16 %v82
    %v193 = vunpack.c.h.b16 %v82
    %v194 = vunpack.c.l.b16 %v83
    %v195 = vunpack.c.h.b16 %v83
    %v196 = vunpack.c.l.b16 %v84
    %v197 = vunpack.c.h.b16 %v84
    %v198 = vunpack.c.l.b16 %v85
    %v199 = vunpack.c.h.b16 %v85
    %v200 = vunpack.c.l.b16 %v86
    %v201 = vunpack.c.h.b16 %v86
    %v202 = vunpack.c.l.b16 %v87
    %v203 = vunpack.c.h.b16 %v87
    %v204 = vunpack.c.l.b16 %v88
    %v205 = vunpack.c.h.b16 %v88
    %v206 = vunpack.c.l.b16 %v89
    %v207 = vunpack.c.h.b16 %v89
    %v208 = vpack.c.b16 %v148, %v144
    %v209 = vpack.c.b16 %v149, %v145
    %v210 = vpack.c.b16 %v150, %v146
    %v211 = vpack.c.b16 %v151, %v147
    %v212 = vpack.c.b16 %v156, %v152
    %v213 = vpack.c.b16 %v157, %v153
    %v214 = vpack.c.b16 %v158, %v154
    %v215 = vpack.c.b16 %v159, %v155
    %v216 = vpack.c.b16 %v164, %v160
    %v217 = vpack.c.b16 %v165, %v161
    %v218 = vpack.c.b16 %v166, %v162
    %v219 = vpack.c.b16 %v167, %v163
    %v220 = vpack.c.b16 %v172, %v168
    %v221 = vpack.c.b16 %v173, %v169
    %v222 = vpack.c.b16 %v174, %v170
    %v223 = vpack.c.b16 %v175, %v171
    %v224 = vpack.c.b16 %v180, %v176
    %v225 = vpack.c.b16 %v181, %v177
    %v226 = vpack.c.b16 %v182, %v178
    %v227 = vpack.c.b16 %v183, %v179
    %v228 = vpack.c.b16 %v188, %v184
    %v229 = vpack.c.b16 %v189, %v185
    %v230 = vpack.c.b16 %v190, %v186
    %v231 = vpack.c.b16 %v191, %v187
    %v232 = vpack.c.b16 %v196, %v192
    %v233 = vpack.c.b16 %v197, %v193
    %v234 = vpack.c.b16 %v198, %v194
    %v235 = vpack.c.b16 %v199, %v195
    %v236 = vpack.c.b16 %v204, %v200
    %v237 = vpack.c.b16 %v205, %v201
    %v238 = vpack.c.b16 %v206, %v202
    %v239 = vpack.c.b16 %v207, %v203
    %272 = vmatprep.subr.bf16.mxu0 %v237
    %273 = vmatpush1.bf16.msra.mxu0 %v236
    %274 = vmatprep.subr.bf16.mxu0 %v233
    %275 = vmatpush1.bf16.msra.mxu0 %v232
    %276 = vmatprep.subr.bf16.mxu0 %v229
    %277 = vmatpush1.bf16.msra.mxu0 %v228
    %278 = vmatprep.subr.bf16.mxu0 %v225
    %279 = vmatpush1.bf16.msra.mxu0 %v224
    %280 = vmatprep.subr.bf16.mxu0 %v221
    %281 = vmatpush1.bf16.msra.mxu0 %v220
    %282 = vmatprep.subr.bf16.mxu0 %v217
    %283 = vmatpush1.bf16.msra.mxu0 %v216
    %284 = vmatprep.subr.bf16.mxu0 %v213
    %285 = vmatpush1.bf16.msra.mxu0 %v212
    %286 = vmatprep.subr.bf16.mxu0 %v209
    %287 = vmatpush1.bf16.msra.mxu0 %v208
    %288 = vmatprep.subr.bf16.mxu0 0
    %289 = vmatpush2.bf16.msra.mxu0 0
    %290 = vmatprep.subr.bf16.mxu0 0
    %291 = vmatpush2.bf16.msra.mxu0 0
    %292 = vmatprep.subr.bf16.mxu0 0
    %293 = vmatpush2.bf16.msra.mxu0 0
    %294 = vmatprep.subr.bf16.mxu0 0
    %295 = vmatpush2.bf16.msra.mxu0 0
    %296 = vmatprep.subr.bf16.mxu0 0
    %297 = vmatpush2.bf16.msra.mxu0 0
    %298 = vmatprep.subr.bf16.mxu0 0
    %299 = vmatpush2.bf16.msra.mxu0 0
    %300 = vmatprep.subr.bf16.mxu0 0
    %301 = vmatpush2.bf16.msra.mxu0 0
    %302 = vmatprep.subr.bf16.mxu0 0
    %303 = vmatpush2.bf16.msra.mxu0 0
    %304 = vmatprep.mubr.bf16.mxu0 0
    %305 = vmatmul.mubr.bf16.gmra.mxu0 %v57
    %v306 = vpop.f32.mrf.mxu0
    %v307 = vadd.f32 %v95, %v306
    %v308 = vpop.f32.mrf.mxu0
    %v309 = vadd.f32 %v99, %v308
    %v310 = vpop.f32.mrf.mxu0
    %v311 = vadd.f32 %v95, %v310
    %v312 = vpop.f32.mrf.mxu0
    %v313 = vadd.f32 %v99, %v312
    %314 = vdwg.mxu0
    %315 = vmatprep.subr.bf16.mxu0 %v239
    %316 = vmatpush1.bf16.msra.mxu0 %v238
    %317 = vmatprep.subr.bf16.mxu0 %v235
    %318 = vmatpush1.bf16.msra.mxu0 %v234
    %319 = vmatprep.subr.bf16.mxu0 %v231
    %320 = vmatpush1.bf16.msra.mxu0 %v230
    %321 = vmatprep.subr.bf16.mxu0 %v227
    %322 = vmatpush1.bf16.msra.mxu0 %v226
    %323 = vmatprep.subr.bf16.mxu0 %v223
    %324 = vmatpush1.bf16.msra.mxu0 %v222
    %325 = vmatprep.subr.bf16.mxu0 %v219
    %326 = vmatpush1.bf16.msra.mxu0 %v218
    %327 = vmatprep.subr.bf16.mxu0 %v215
    %328 = vmatpush1.bf16.msra.mxu0 %v214
    %329 = vmatprep.subr.bf16.mxu0 %v211
    %330 = vmatpush1.bf16.msra.mxu0 %v210
    %331 = vmatprep.subr.bf16.mxu0 0
    %332 = vmatpush2.bf16.msra.mxu0 0
    %333 = vmatprep.subr.bf16.mxu0 0
    %334 = vmatpush2.bf16.msra.mxu0 0
    %335 = vmatprep.subr.bf16.mxu0 0
    %336 = vmatpush2.bf16.msra.mxu0 0
    %337 = vmatprep.subr.bf16.mxu0 0
    %338 = vmatpush2.bf16.msra.mxu0 0
    %339 = vmatprep.subr.bf16.mxu0 0
    %340 = vmatpush2.bf16.msra.mxu0 0
    %341 = vmatprep.subr.bf16.mxu0 0
    %342 = vmatpush2.bf16.msra.mxu0 0
    %343 = vmatprep.subr.bf16.mxu0 0
    %344 = vmatpush2.bf16.msra.mxu0 0
    %345 = vmatprep.subr.bf16.mxu0 0
    %346 = vmatpush2.bf16.msra.mxu0 0
    %347 = vmatprep.mubr.bf16.mxu0 0
    %348 = vmatmul.mubr.bf16.gmra.mxu0 %v57
    %v349 = vpop.f32.mrf.mxu0
    %v350 = vadd.f32 %v103, %v349
    %v351 = vpop.f32.mrf.mxu0
    %v352 = vadd.f32 %v107, %v351
    %v353 = vpop.f32.mrf.mxu0
    %v354 = vadd.f32 %v103, %v353
    %v355 = vpop.f32.mrf.mxu0
    %v356 = vadd.f32 %v107, %v355
    %357 = vdwg.mxu0
    %v358 = vmul.f32 %v307, 0.5
    %v359 = vmul.f32 %v309, 0.5
    %v360 = vmul.f32 %v350, 0.5
    %v361 = vmul.f32 %v352, 0.5
    %v362 = vmul.f32 %v311, 0.5
    %v363 = vmul.f32 %v313, 0.5
    %v364 = vmul.f32 %v354, 0.5
    %v365 = vmul.f32 %v356, 0.5
    %v366 = vmul.f32 %v307, 0.70710677
    %v367 = vmul.f32 %v309, 0.70710677
    %v368 = vmul.f32 %v350, 0.70710677
    %v369 = vmul.f32 %v352, 0.70710677
    %v370 = vmul.f32 %v311, 0.70710677
    %v371 = vmul.f32 %v313, 0.70710677
    %v372 = vmul.f32 %v354, 0.70710677
    %v373 = vmul.f32 %v356, 0.70710677
    %v374 = vand.u32 2147483647, %v366
    %v375 = vand.u32 2147483647, %v367
    %v376 = vand.u32 2147483647, %v368
    %v377 = vand.u32 2147483647, %v369
    %v378 = vand.u32 2147483647, %v370
    %v379 = vand.u32 2147483647, %v371
    %v380 = vand.u32 2147483647, %v372
    %v381 = vand.u32 2147483647, %v373
    %v382 = vmul.f32 %v374, 0.3275911
    %v383 = vmul.f32 %v375, 0.3275911
    %v384 = vmul.f32 %v376, 0.3275911
    %v385 = vmul.f32 %v377, 0.3275911
    %v386 = vmul.f32 %v378, 0.3275911
    %v387 = vmul.f32 %v379, 0.3275911
    %v388 = vmul.f32 %v380, 0.3275911
    %v389 = vmul.f32 %v381, 0.3275911
    %v390 = vadd.f32 %v382, 1.0
    %v391 = vadd.f32 %v383, 1.0
    %v392 = vadd.f32 %v384, 1.0
    %v393 = vadd.f32 %v385, 1.0
    %v394 = vadd.f32 %v386, 1.0
    %v395 = vadd.f32 %v387, 1.0
    %v396 = vadd.f32 %v388, 1.0
    %v397 = vadd.f32 %v389, 1.0
    %v398 = vrcp.pop %v390
    %v399 = vrcp.pop %v391
    %v400 = vrcp.pop %v392
    %v401 = vrcp.pop %v393
    %v402 = vrcp.pop %v394
    %v403 = vrcp.pop %v395
    %v404 = vrcp.pop %v396
    %v405 = vrcp.pop %v397
    %v406 = vmul.f32 %v390, %v398
    %v407 = vmul.f32 %v391, %v399
    %v408 = vmul.f32 %v392, %v400
    %v409 = vmul.f32 %v393, %v401
    %v410 = vmul.f32 %v394, %v402
    %v411 = vmul.f32 %v395, %v403
    %v412 = vmul.f32 %v396, %v404
    %v413 = vmul.f32 %v397, %v405
    %v414 = vsub.f32 2.0, %v406
    %v415 = vsub.f32 2.0, %v407
    %v416 = vsub.f32 2.0, %v408
    %v417 = vsub.f32 2.0, %v409
    %v418 = vsub.f32 2.0, %v410
    %v419 = vsub.f32 2.0, %v411
    %v420 = vsub.f32 2.0, %v412
    %v421 = vsub.f32 2.0, %v413
    %v422 = vmul.f32 %v398, %v414
    %v423 = vmul.f32 %v399, %v415
    %v424 = vmul.f32 %v400, %v416
    %v425 = vmul.f32 %v401, %v417
    %v426 = vmul.f32 %v402, %v418
    %v427 = vmul.f32 %v403, %v419
    %v428 = vmul.f32 %v404, %v420
    %v429 = vmul.f32 %v405, %v421
    %v430 = vmul.f32 %v422, 1.0614054
    %v431 = vmul.f32 %v423, 1.0614054
    %v432 = vmul.f32 %v424, 1.0614054
    %v433 = vmul.f32 %v425, 1.0614054
    %v434 = vmul.f32 %v426, 1.0614054
    %v435 = vmul.f32 %v427, 1.0614054
    %v436 = vmul.f32 %v428, 1.0614054
    %v437 = vmul.f32 %v429, 1.0614054
    %v438 = vadd.f32 %v430, -1.4531521
    %v439 = vadd.f32 %v431, -1.4531521
    %v440 = vadd.f32 %v432, -1.4531521
    %v441 = vadd.f32 %v433, -1.4531521
    %v442 = vadd.f32 %v434, -1.4531521
    %v443 = vadd.f32 %v435, -1.4531521
    %v444 = vadd.f32 %v436, -1.4531521
    %v445 = vadd.f32 %v437, -1.4531521
    %v446 = vmul.f32 %v438, %v422
    %v447 = vmul.f32 %v439, %v423
    %v448 = vmul.f32 %v440, %v424
    %v449 = vmul.f32 %v441, %v425
    %v450 = vmul.f32 %v442, %v426
    %v451 = vmul.f32 %v443, %v427
    %v452 = vmul.f32 %v444, %v428
    %v453 = vmul.f32 %v445, %v429
    %v454 = vadd.f32 %v446, 1.4214138
    %v455 = vadd.f32 %v447, 1.4214138
    %v456 = vadd.f32 %v448, 1.4214138
    %v457 = vadd.f32 %v449, 1.4214138
    %v458 = vadd.f32 %v450, 1.4214138
    %v459 = vadd.f32 %v451, 1.4214138
    %v460 = vadd.f32 %v452, 1.4214138
    %v461 = vadd.f32 %v453, 1.4214138
    %v462 = vmul.f32 %v454, %v422
    %v463 = vmul.f32 %v455, %v423
    %v464 = vmul.f32 %v456, %v424
    %v465 = vmul.f32 %v457, %v425
    %v466 = vmul.f32 %v458, %v426
    %v467 = vmul.f32 %v459, %v427
    %v468 = vmul.f32 %v460, %v428
    %v469 = vmul.f32 %v461, %v429
    %v470 = vadd.f32 %v462, -0.28449672
    %v471 = vadd.f32 %v463, -0.28449672
    %v472 = vadd.f32 %v464, -0.28449672
    %v473 = vadd.f32 %v465, -0.28449672
    %v474 = vadd.f32 %v466, -0.28449672
    %v475 = vadd.f32 %v467, -0.28449672
    %v476 = vadd.f32 %v468, -0.28449672
    %v477 = vadd.f32 %v469, -0.28449672
    %v478 = vmul.f32 %v470, %v422
    %v479 = vmul.f32 %v471, %v423
    %v480 = vmul.f32 %v472, %v424
    %v481 = vmul.f32 %v473, %v425
    %v482 = vmul.f32 %v474, %v426
    %v483 = vmul.f32 %v475, %v427
    %v484 = vmul.f32 %v476, %v428
    %v485 = vmul.f32 %v477, %v429
    %v486 = vadd.f32 %v478, 0.2548296
    %v487 = vadd.f32 %v479, 0.2548296
    %v488 = vadd.f32 %v480, 0.2548296
    %v489 = vadd.f32 %v481, 0.2548296
    %v490 = vadd.f32 %v482, 0.2548296
    %v491 = vadd.f32 %v483, 0.2548296
    %v492 = vadd.f32 %v484, 0.2548296
    %v493 = vadd.f32 %v485, 0.2548296
    %v494 = vmul.f32 %v486, %v422
    %v495 = vmul.f32 %v487, %v423
    %v496 = vmul.f32 %v488, %v424
    %v497 = vmul.f32 %v489, %v425
    %v498 = vmul.f32 %v490, %v426
    %v499 = vmul.f32 %v491, %v427
    %v500 = vmul.f32 %v492, %v428
    %v501 = vmul.f32 %v493, %v429
    %v502 = vsub.f32 0.0, %v374
    %v503 = vsub.f32 0.0, %v375
    %v504 = vsub.f32 0.0, %v376
    %v505 = vsub.f32 0.0, %v377
    %v506 = vsub.f32 0.0, %v378
    %v507 = vsub.f32 0.0, %v379
    %v508 = vsub.f32 0.0, %v380
    %v509 = vsub.f32 0.0, %v381
    %v510 = vmul.f32 %v502, %v374
    %v511 = vmul.f32 %v503, %v375
    %v512 = vmul.f32 %v504, %v376
    %v513 = vmul.f32 %v505, %v377
    %v514 = vmul.f32 %v506, %v378
    %v515 = vmul.f32 %v507, %v379
    %v516 = vmul.f32 %v508, %v380
    %v517 = vmul.f32 %v509, %v381
    %v518 = vmul.f32 %v510, 1.442695
    %v519 = vpow.pop %v518
    %v520 = vmul.f32 %v511, 1.442695
    %v521 = vpow.pop %v520
    %v522 = vmul.f32 %v512, 1.442695
    %v523 = vpow.pop %v522
    %v524 = vmul.f32 %v513, 1.442695
    %v525 = vpow.pop %v524
    %v526 = vmul.f32 %v514, 1.442695
    %v527 = vpow.pop %v526
    %v528 = vmul.f32 %v515, 1.442695
    %v529 = vpow.pop %v528
    %v530 = vmul.f32 %v516, 1.442695
    %v531 = vpow.pop %v530
    %v532 = vmul.f32 %v517, 1.442695
    %v533 = vpow.pop %v532
    %v534 = vmul.f32 %v494, %v519
    %v535 = vmul.f32 %v495, %v521
    %v536 = vmul.f32 %v496, %v523
    %v537 = vmul.f32 %v497, %v525
    %v538 = vmul.f32 %v498, %v527
    %v539 = vmul.f32 %v499, %v529
    %v540 = vmul.f32 %v500, %v531
    %v541 = vmul.f32 %v501, %v533
    %v542 = vsub.f32 1.0, %v534
    %v543 = vsub.f32 1.0, %v535
    %v544 = vsub.f32 1.0, %v536
    %v545 = vsub.f32 1.0, %v537
    %v546 = vsub.f32 1.0, %v538
    %v547 = vsub.f32 1.0, %v539
    %v548 = vsub.f32 1.0, %v540
    %v549 = vsub.f32 1.0, %v541
    %vm550 = vcmp.ge.f32.partialorder %v366, 0.0
    %vm551 = vcmp.ge.f32.partialorder %v367, 0.0
    %vm552 = vcmp.ge.f32.partialorder %v368, 0.0
    %vm553 = vcmp.ge.f32.partialorder %v369, 0.0
    %vm554 = vcmp.ge.f32.partialorder %v370, 0.0
    %vm555 = vcmp.ge.f32.partialorder %v371, 0.0
    %vm556 = vcmp.ge.f32.partialorder %v372, 0.0
    %vm557 = vcmp.ge.f32.partialorder %v373, 0.0
    %v558 = vsub.f32 0.0, %v542
    %v559 = vsub.f32 0.0, %v543
    %v560 = vsub.f32 0.0, %v544
    %v561 = vsub.f32 0.0, %v545
    %v562 = vsub.f32 0.0, %v546
    %v563 = vsub.f32 0.0, %v547
    %v564 = vsub.f32 0.0, %v548
    %v565 = vsub.f32 0.0, %v549
    %v566 = vsel %vm550, %v542, %v558
    %v567 = vsel %vm551, %v543, %v559
    %v568 = vsel %vm552, %v544, %v560
    %v569 = vsel %vm553, %v545, %v561
    %v570 = vsel %vm554, %v546, %v562
    %v571 = vsel %vm555, %v547, %v563
    %v572 = vsel %vm556, %v548, %v564
    %v573 = vsel %vm557, %v549, %v565
    %v574 = vmul.f32 %v358, %v566
    %v575 = vmul.f32 %v359, %v567
    %v576 = vmul.f32 %v360, %v568
    %v577 = vmul.f32 %v361, %v569
    %v578 = vmul.f32 %v362, %v570
    %v579 = vmul.f32 %v363, %v571
    %v580 = vmul.f32 %v364, %v572
    %v581 = vmul.f32 %v365, %v573
    %v582 = vadd.f32 %v358, %v574
    %v583 = vadd.f32 %v359, %v575
    %v584 = vadd.f32 %v360, %v576
    %v585 = vadd.f32 %v361, %v577
    %v586 = vadd.f32 %v362, %v578
    %v587 = vadd.f32 %v363, %v579
    %v588 = vadd.f32 %v364, %v580
    %v589 = vadd.f32 %v365, %v581
    %590 = vst [vmem:[#allocation8] sm:$0xff] %v582
    %591 = vst [vmem:[#allocation8 + $0x8] sm:$0xff] %v583
    %592 = vst [vmem:[#allocation8 + $0x10] sm:$0xff] %v584
    %593 = vst [vmem:[#allocation8 + $0x18] sm:$0xff] %v585
    %594 = vst [vmem:[#allocation8 + $0x20] sm:$0xff] %v586
    %595 = vst [vmem:[#allocation8 + $0x28] sm:$0xff] %v587
    %596 = vst [vmem:[#allocation8 + $0x30] sm:$0xff] %v588
    %597 = vst [vmem:[#allocation8 + $0x38] sm:$0xff] %v589
    // Predicated region
    $region26: #{tpu_custom_call.1} parent=1 // pred_check
      _
    $region27: #{tpu_custom_call.1} parent=1 // pred_check_branch
      %599 = sbr.rel (0) target = $region29
    $region28: #{tpu_custom_call.1} parent=1 // pred_region
      %s601 = ssub.s32 1024, 1024
      %602 = vsyncadd [#allocation4], %s601
      %s603 = sshll.u32 [#allocation8], 4
      %s604 = int_to_ptr.vmem [resolvable:$true] %s603
      %609 = dma.vmem_to_hbm [thread:$0]  %s604, 1024, %s3, [#allocation4], 512, 512, 32
    $region29: #{tpu_custom_call.1} parent=1 // pred_fallthru
      _
    // Predicated region
    $region30: #{tpu_custom_call.1} parent=1 // pred_check
      _
    $region31: #{tpu_custom_call.1} parent=1 // pred_check_branch
      %611 = sbr.rel (0) target = $region33
    $region32: #{tpu_custom_call.1} parent=1 // pred_region
      %612 = dma.done [#allocation4], 1024
    $region33: #{tpu_custom_call.1} parent=1 // pred_fallthru
      _
    %613 = vsyncpa [#allocation3], 1
    %614 = vsyncpa [#allocation6], 1
    %615 = vsyncpa [#allocation4], 1

</llo_original>
